<compile_context>
chip_gen: v5e
topology: v5e:2x2
jax: 0.10.0
libtpu: 0.0.40
codegen_flags: <defaults>
</compile_context>

<pallas_src>
import functools
from typing import NamedTuple

import jax
import jax.numpy as jnp
from jax.experimental import pallas as pl
from jax.experimental.pallas import tpu as pltpu


def _cdiv(a: int, b: int) -> int:
    return -(-a // b)


def _round_up(v: int, m: int) -> int:
    return _cdiv(v, m) * m


# ---------------------------------------------------------------------------
# Kernel: out = relu(x @ w1 + b1) @ w2 + b2, hidden dim reduced over grid axis 1.
# ---------------------------------------------------------------------------
def mlp_kernel(x_ref, w1_ref, b1_ref, w2_ref, b2_ref, o_ref, acc_ref):
    k = pl.program_id(1)

    @pl.when(k == 0)
    def _init():
        acc_ref[...] = jnp.zeros_like(acc_ref)

    # Hidden chunk: bf16 MXU matmul, f32 accumulate, f32 bias + ReLU epilogue.
    h = jnp.dot(x_ref[...], w1_ref[...], preferred_element_type=jnp.float32)
    h = jnp.maximum(h + b1_ref[...], 0.0)          # b1 is (1, th) f32, broadcasts
    # dropout (eval mode) -> identity
    # TODO(synk): training-mode p=0.5 dropout (pltpu.prng_seed + prng_random_bits
    #             mask/scale) is not wired in.
    acc_ref[...] += jnp.dot(h.astype(w2_ref.dtype), w2_ref[...],
                            preferred_element_type=jnp.float32)

    @pl.when(k == pl.num_programs(1) - 1)
    def _finalize():
        o_ref[...] = (acc_ref[...] + b2_ref[...]).astype(o_ref.dtype)


# ---------------------------------------------------------------------------
# Hardware / plan helpers (all static Python, evaluated outside the hot path).
# ---------------------------------------------------------------------------
def _hw_config():
    """(vmem_limit_bytes, tiling_budget_bytes, min_grid_steps, lane_mult)."""
    kind = ""
    try:
        kind = jax.devices()[0].device_kind.lower()
    except Exception:
        pass
    is_v7 = ("v7" in kind) or ("tpu7" in kind) or ("7x" in kind)

    phys = None
    try:
        info = pltpu.get_tpu_info()
        phys = int(getattr(info, "vmem_capacity_bytes", 0)) or None
    except Exception:
        phys = None
    if phys is None:
        if is_v7:
            phys = 64 * 1024 * 1024
        elif ("v5" in kind) or ("v6" in kind):
            phys = 128 * 1024 * 1024
        else:
            phys = 64 * 1024 * 1024          # conservative default

    vmem_limit = (phys * 3) // 4             # ~96 MiB on 128 MiB parts, ~48 MiB on v7x
    budget = (phys * 55) // 100              # ~70 MiB / ~35 MiB tiling budget
    min_steps = 4 if (is_v7 or phys <= 64 * 1024 * 1024) else 2
    # v6e/v7x MXUs are 2x256x256: prefer 256-wide weight/output panels when the
    # real dim exceeds 128; v5e (4x128x128) keeps 128 rounding.
    lane_mult = 256 if (is_v7 or "v6" in kind) else 128
    return int(vmem_limit), int(budget), int(min_steps), int(lane_mult)


class MLPPlan(NamedTuple):
    f: int
    h: int
    c: int
    fp: int
    hp: int
    cp: int
    th: int
    compute_dtype: str
    out_dtype: str
    vmem_limit: int
    budget: int
    min_steps: int


def prepare_mlp(w1, b1, w2, b2, *, compute_dtype=jnp.bfloat16,
                out_dtype=jnp.float32):
    """Pad + cast the static parameters ONCE (outside the per-call hot path)."""
    f, h = w1.shape
    c = w2.shape[1]
    vmem_limit, budget, min_steps, lane_mult = _hw_config()
    x_bytes = jnp.dtype(compute_dtype).itemsize

    def _lane_pad(d):
        return 128 if d <= 128 else _round_up(d, lane_mult)

    fp = _round_up(max(f, 128), 128)
    hp = _lane_pad(h)
    cp = _lane_pad(c)

    # Hidden-chunk size: keep the (double-buffered) w1/w2 panels under ~half the
    # tiling budget so the node tiles still get room.
    def _w_bytes(th):
        return 2 * (fp * th + th * cp) * x_bytes + 2 * (th + cp) * 4

    th = hp
    if _w_bytes(th) > budget // 2:
        th = 512
        while th > 128 and _w_bytes(th) > budget // 2:
            th -= 128
        th = max(th, 128)
        hp = _round_up(hp, th)
    # TODO(synk): if fp/cp are so large that even th=128 panels overflow the
    #             budget, the output (cp) axis would also need tiling.

    w1_p = jnp.zeros((fp, hp), compute_dtype).at[:f, :h].set(
        w1.astype(compute_dtype))
    w2_p = jnp.zeros((hp, cp), compute_dtype).at[:h, :c].set(
        w2.astype(compute_dtype))
    b1_p = jnp.zeros((1, hp), jnp.float32).at[0, :h].set(b1.astype(jnp.float32))
    b2_p = jnp.zeros((1, cp), jnp.float32).at[0, :c].set(b2.astype(jnp.float32))

    plan = MLPPlan(f=f, h=h, c=c, fp=fp, hp=hp, cp=cp, th=th,
                   compute_dtype=jnp.dtype(compute_dtype).name,
                   out_dtype=jnp.dtype(out_dtype).name,
                   vmem_limit=vmem_limit, budget=budget, min_steps=min_steps)
    return (w1_p, b1_p, w2_p, b2_p), plan


def _pick_node_tile(n: int, plan: MLPPlan) -> int:
    x_bytes = jnp.dtype(plan.compute_dtype).itemsize
    out_bytes = jnp.dtype(plan.out_dtype).itemsize
    # Inputs/outputs are double-buffered (2x); accumulator scratch and the live
    # f32 hidden chunk are single copies.
    weight_bytes = (2 * (plan.fp * plan.th + plan.th * plan.cp) * x_bytes
                    + 2 * (plan.th + plan.cp) * 4)
    per_row = (2 * plan.fp * x_bytes        # x tile
               + 2 * plan.cp * out_bytes    # out tile
               + plan.cp * 4                # f32 accumulator scratch
               + plan.th * 4)               # live f32 hidden chunk
    tn = (plan.budget - weight_bytes) // max(per_row, 1)
    tn = max(16, min(int(tn), 1024))
    tn = max(16, (tn // 16) * 16)           # bf16 sublane packing
    # Keep >= min_steps grid steps when N is large enough (v7x cross-core
    # sharding + DMA/compute overlap).
    if n > plan.min_steps * 16:
        tn = min(tn, _round_up(_cdiv(n, plan.min_steps), 16))
    tn = max(16, tn)
    # Rebalance so n_pad does not overshoot by nearly a whole tile.
    steps = _cdiv(n, tn)
    tn = _round_up(_cdiv(n, steps), 16)
    return int(tn)


@functools.partial(jax.jit, static_argnames=("plan",))
def mlp_forward(x, w1_p, b1_p, w2_p, b2_p, *, plan: MLPPlan):
    """x: [N, F] -> [N, C] (out_dtype, f32 by default)."""
    n, f = x.shape
    assert f == plan.f, (f, plan.f)
    compute_dtype = jnp.dtype(plan.compute_dtype)
    out_dtype = jnp.dtype(plan.out_dtype)

    tn = _pick_node_tile(n, plan)
    n_pad = _round_up(n, tn)
    h_tiles = plan.hp // plan.th
    grid = (n_pad // tn, h_tiles)

    # Pad/cast x only when actually needed (skip the extra HBM round-trip).
    if n_pad == n and plan.fp == f and x.dtype == compute_dtype:
        x_p = x
    else:
        x_p = jnp.zeros((n_pad, plan.fp), compute_dtype).at[:n, :f].set(
            x.astype(compute_dtype))

    x_bytes = compute_dtype.itemsize
    w_fetches = 1 if h_tiles == 1 else grid[0]
    flops = 2 * n_pad * plan.fp * plan.hp + 2 * n_pad * plan.hp * plan.cp
    bytes_accessed = (
        n_pad * plan.fp * x_bytes
        + w_fetches * (plan.fp * plan.hp + plan.hp * plan.cp) * x_bytes
        + w_fetches * (plan.hp + plan.cp) * 4
        + n_pad * plan.cp * out_dtype.itemsize)

    out = pl.pallas_call(
        mlp_kernel,
        out_shape=jax.ShapeDtypeStruct((n_pad, plan.cp), out_dtype),
        grid=grid,
        in_specs=[
            pl.BlockSpec((tn, plan.fp), lambda i, k: (i, 0)),        # x tile
            pl.BlockSpec((plan.fp, plan.th), lambda i, k: (0, k)),   # w1 chunk
            pl.BlockSpec((1, plan.th), lambda i, k: (0, k)),         # b1 chunk
            pl.BlockSpec((plan.th, plan.cp), lambda i, k: (k, 0)),   # w2 chunk
            pl.BlockSpec((1, plan.cp), lambda i, k: (0, 0)),         # b2
        ],
        out_specs=pl.BlockSpec((tn, plan.cp), lambda i, k: (i, 0)),
        scratch_shapes=[pltpu.VMEM((tn, plan.cp), jnp.float32)],
        compiler_params=pltpu.CompilerParams(
            dimension_semantics=("parallel", "arbitrary"),
            vmem_limit_bytes=plan.vmem_limit,
        ),
        cost_estimate=pl.CostEstimate(
            flops=int(flops), transcendentals=0,
            bytes_accessed=int(bytes_accessed)),
    )(x_p, w1_p, b1_p, w2_p, b2_p)

    # Slice away node padding and lane padding.
    return out[:n, :plan.c]


def init_params(key, num_features, num_classes, hidden_channels):
    """Deterministic nn.Linear-style init: U(-1/sqrt(fan_in), 1/sqrt(fan_in))."""
    k1, k2, k3, k4 = jax.random.split(key, 4)
    bound1 = 1.0 / jnp.sqrt(jnp.float32(num_features))
    bound2 = 1.0 / jnp.sqrt(jnp.float32(hidden_channels))
    w1 = jax.random.uniform(k1, (num_features, hidden_channels), jnp.float32,
                            minval=-bound1, maxval=bound1)
    b1 = jax.random.uniform(k2, (hidden_channels,), jnp.float32,
                            minval=-bound1, maxval=bound1)
    w2 = jax.random.uniform(k3, (hidden_channels, num_classes), jnp.float32,
                            minval=-bound2, maxval=bound2)
    b2 = jax.random.uniform(k4, (num_classes,), jnp.float32,
                            minval=-bound2, maxval=bound2)
    return w1, b1, w2, b2


if __name__ == "__main__":
    num_nodes = 8
    num_features = 16
    hidden_channels = 32
    num_classes = 8

    key = jax.random.PRNGKey(0)
    kx, kp = jax.random.split(key)
    x = jax.random.normal(kx, (num_nodes, num_features), jnp.float32)
    w1, b1, w2, b2 = init_params(kp, num_features, num_classes, hidden_channels)

    # Pad/cast the static parameters once, outside the hot path.
    params, plan = prepare_mlp(w1, b1, w2, b2)

    out = mlp_forward(x, *params, plan=plan)
    jax.block_until_ready(out)

    # Reference in plain JAX mirroring the kernel math (bf16 operands, f32 acc,
    # f32 bias/ReLU epilogue, eval-mode dropout == identity).
    xc = x.astype(jnp.bfloat16)
    w1c = w1.astype(jnp.bfloat16)
    w2c = w2.astype(jnp.bfloat16)
    h_ref = jnp.dot(xc, w1c, preferred_element_type=jnp.float32) + b1
    h_ref = jnp.maximum(h_ref, 0.0)
    ref = jnp.dot(h_ref.astype(jnp.bfloat16), w2c,
                  preferred_element_type=jnp.float32) + b2

    assert out.shape == (num_nodes, num_classes)
    assert out.dtype == jnp.float32
    assert jnp.allclose(out, ref, atol=1e-4, rtol=1e-4), (
        float(jnp.max(jnp.abs(out - ref))))

    print("KERNEL_OK")
</pallas_src>

<mosaic_0001>
module attributes {stable_mosaic.version = 11 : i64} {
  func.func @mlp_kernel(%arg0: i32, %arg1: i32, %arg2: memref<16x128xbf16, #tpu.memory_space<vmem>>, %arg3: memref<128x128xbf16, #tpu.memory_space<vmem>>, %arg4: memref<1x128xf32, #tpu.memory_space<vmem>>, %arg5: memref<128x128xbf16, #tpu.memory_space<vmem>>, %arg6: memref<1x128xf32, #tpu.memory_space<vmem>>, %arg7: memref<16x128xf32, #tpu.memory_space<vmem>>, %arg8: memref<16x128xf32, #tpu.memory_space<vmem>>) attributes {dimension_semantics = [#tpu.dimension_semantics<parallel>, #tpu.dimension_semantics<arbitrary>], iteration_bounds = array<i64: 1, 1>, scalar_prefetch = 0 : i64, scratch_operands = 1 : i64, tpu.core_type = #tpu.core_type<tc>, window_params = [{transform_indices = @transform_0, window_bounds = array<i64: 16, 128>}, {transform_indices = @transform_1, window_bounds = array<i64: 128, 128>}, {transform_indices = @transform_2, window_bounds = array<i64: 1, 128>}, {transform_indices = @transform_3, window_bounds = array<i64: 128, 128>}, {pipeline_mode = #tpu.pipeline_mode<synchronous>, transform_indices = @transform_4, window_bounds = array<i64: 1, 128>}, {transform_indices = @transform_5, window_bounds = array<i64: 16, 128>}]} {
    %c0_i32 = arith.constant 0 : i32
    %0 = arith.cmpi eq, %arg1, %c0_i32 : i32
    %1 = arith.extui %0 : i1 to i32
    %c0_i32_0 = arith.constant 0 : i32
    %2 = arith.cmpi ne, %1, %c0_i32_0 : i32
    scf.if %2 {
      %cst_16 = arith.constant 0.000000e+00 : f32
      %20 = vector.broadcast %cst_16 : f32 to vector<16x128xf32>
      %c0_17 = arith.constant 0 : index
      %c0_18 = arith.constant 0 : index
      %21 = vector.load %arg8[%c0_17, %c0_18] : memref<16x128xf32, #tpu.memory_space<vmem>>, vector<16x128xf32>
      tpu.vector_store %arg8[%c0_17, %c0_18], %20 {strides = array<i32>} : memref<16x128xf32, #tpu.memory_space<vmem>>, vector<16x128xf32>,
    } else {
    }
    %c0 = arith.constant 0 : index
    %c0_1 = arith.constant 0 : index
    %3 = vector.load %arg2[%c0, %c0_1] : memref<16x128xbf16, #tpu.memory_space<vmem>>, vector<16x128xbf16>
    %c0_2 = arith.constant 0 : index
    %c0_3 = arith.constant 0 : index
    %4 = vector.load %arg3[%c0_2, %c0_3] : memref<128x128xbf16, #tpu.memory_space<vmem>>, vector<128x128xbf16>
    %cst = arith.constant dense<0.000000e+00> : vector<16x128xf32>
    %5 = tpu.matmul %3, %4, %cst {dimension_numbers = #tpu.dot_dimension_numbers<[1], [0], [0], [1], [0, 0, 1, 1], [], []>} : vector<16x128xbf16>, vector<128x128xbf16>, vector<16x128xf32> -> vector<16x128xf32>
    %c0_4 = arith.constant 0 : index
    %c0_5 = arith.constant 0 : index
    %6 = vector.load %arg4[%c0_4, %c0_5] : memref<1x128xf32, #tpu.memory_space<vmem>>, vector<1x128xf32>
    %7 = vector.broadcast %6 : vector<1x128xf32> to vector<16x128xf32>
    %8 = arith.addf %5, %7 : vector<16x128xf32>
    %cst_6 = arith.constant 0.000000e+00 : f32
    %9 = vector.broadcast %cst_6 : f32 to vector<16x128xf32>
    %10 = arith.maximumf %8, %9 : vector<16x128xf32>
    %c0_7 = arith.constant 0 : index
    %c0_8 = arith.constant 0 : index
    %11 = vector.load %arg8[%c0_7, %c0_8] : memref<16x128xf32, #tpu.memory_space<vmem>>, vector<16x128xf32>
    %12 = arith.truncf %10 : vector<16x128xf32> to vector<16x128xbf16>
    %c0_9 = arith.constant 0 : index
    %c0_10 = arith.constant 0 : index
    %13 = vector.load %arg5[%c0_9, %c0_10] : memref<128x128xbf16, #tpu.memory_space<vmem>>, vector<128x128xbf16>
    %cst_11 = arith.constant dense<0.000000e+00> : vector<16x128xf32>
    %14 = tpu.matmul %12, %13, %cst_11 {dimension_numbers = #tpu.dot_dimension_numbers<[1], [0], [0], [1], [0, 0, 1, 1], [], []>} : vector<16x128xbf16>, vector<128x128xbf16>, vector<16x128xf32> -> vector<16x128xf32>
    %15 = arith.addf %11, %14 : vector<16x128xf32>
    %c0_12 = arith.constant 0 : index
    %c0_13 = arith.constant 0 : index
    %16 = vector.load %arg8[%c0_12, %c0_13] : memref<16x128xf32, #tpu.memory_space<vmem>>, vector<16x128xf32>
    tpu.vector_store %arg8[%c0_12, %c0_13], %15 {strides = array<i32>} : memref<16x128xf32, #tpu.memory_space<vmem>>, vector<16x128xf32>,
    %c0_i32_14 = arith.constant 0 : i32
    %17 = arith.cmpi eq, %arg1, %c0_i32_14 : i32
    %18 = arith.extui %17 : i1 to i32
    %c0_i32_15 = arith.constant 0 : i32
    %19 = arith.cmpi ne, %18, %c0_i32_15 : i32
    scf.if %19 {
      %c0_16 = arith.constant 0 : index
      %c0_17 = arith.constant 0 : index
      %20 = vector.load %arg8[%c0_16, %c0_17] : memref<16x128xf32, #tpu.memory_space<vmem>>, vector<16x128xf32>
      %c0_18 = arith.constant 0 : index
      %c0_19 = arith.constant 0 : index
      %21 = vector.load %arg6[%c0_18, %c0_19] : memref<1x128xf32, #tpu.memory_space<vmem>>, vector<1x128xf32>
      %22 = vector.broadcast %21 : vector<1x128xf32> to vector<16x128xf32>
      %23 = arith.addf %20, %22 : vector<16x128xf32>
      %c0_20 = arith.constant 0 : index
      %c0_21 = arith.constant 0 : index
      %24 = vector.load %arg7[%c0_20, %c0_21] : memref<16x128xf32, #tpu.memory_space<vmem>>, vector<16x128xf32>
      tpu.vector_store %arg7[%c0_20, %c0_21], %23 {strides = array<i32>} : memref<16x128xf32, #tpu.memory_space<vmem>>, vector<16x128xf32>,
    } else {
    }
    return
  }
  func.func @transform_0(%arg0: i32, %arg1: i32) -> (i32, i32) {
    %c0_i32 = arith.constant 0 : i32
    %c0_i32_0 = arith.constant 0 : i32
    return %arg0, %c0_i32 : i32, i32
  }
  func.func @transform_1(%arg0: i32, %arg1: i32) -> (i32, i32) {
    %c0_i32 = arith.constant 0 : i32
    %c0_i32_0 = arith.constant 0 : i32
    return %c0_i32, %arg1 : i32, i32
  }
  func.func @transform_2(%arg0: i32, %arg1: i32) -> (i32, i32) {
    %c0_i32 = arith.constant 0 : i32
    %c0_i32_0 = arith.constant 0 : i32
    return %c0_i32, %arg1 : i32, i32
  }
  func.func @transform_3(%arg0: i32, %arg1: i32) -> (i32, i32) {
    %c0_i32 = arith.constant 0 : i32
    %c0_i32_0 = arith.constant 0 : i32
    return %arg1, %c0_i32 : i32, i32
  }
  func.func @transform_4(%arg0: i32, %arg1: i32) -> (i32, i32) {
    %c0_i32 = arith.constant 0 : i32
    %c0_i32_0 = arith.constant 0 : i32
    %c0_i32_1 = arith.constant 0 : i32
    return %c0_i32, %c0_i32_0 : i32, i32
  }
  func.func @transform_5(%arg0: i32, %arg1: i32) -> (i32, i32) {
    %c0_i32 = arith.constant 0 : i32
    %c0_i32_0 = arith.constant 0 : i32
    return %arg0, %c0_i32 : i32, i32
  }
}

</mosaic_0001>

<llo_original>
// kernel: mlp_forward.1
$region0: #{mlp_forward.1}
  #allocation0 [shape = 'u32[]', space=smem, size = 0x4, offset = 0x4, fixed_abs, tag = 'smem constant byte address 0x4 - core index']
  #allocation1 [shape = 'u32[72,128]{1,0:T(1,128)}', space=vmem, size = 0x9000, scoped, tag = 'internal scratch']
  #allocation2 [shape = 'f32[16,128]{1,0:T(8,128)}', space=vmem, size = 0x2000, scoped, tag = 'scratch operand']
  %s0 = inlined_call_operand.vmem [shape: bf16[16,128], index: 0, kind: input, shape index: {}]
  %s1 = inlined_call_operand.hbm [shape: bf16[128,128], index: 1, kind: input, shape index: {}]
  %s2 = inlined_call_operand.vmem [shape: f32[1,128], index: 2, kind: input, shape index: {}]
  %s3 = inlined_call_operand.hbm [shape: bf16[128,128], index: 3, kind: input, shape index: {}]
  %s4 = inlined_call_operand.vmem [shape: f32[1,128], index: 4, kind: input, shape index: {}]
  %s5 = inlined_call_operand.vmem [shape: f32[16,128], index: 5, kind: output, shape index: {}]
  %s6 = sld [smem:[#allocation0]]
  $region46: #{mlp_forward.1} parent=0
    _
  %s8 = ssub.s32 1, %s6
  %s9 = scalar_select 0, %s8, %s6
  $region1: #{mlp_forward.1} parent=0
    #allocation3 [shape = 'u8[32768]{0}', space=vmem, size = 0x8000, scoped, tag = 'input window, operand 1, single buffered']
    #allocation4 [shape = 's32[1]{0}', space=sflag, size = 0x4, scoped, tag = 'scoped memory for mlp_forward.1']
    #allocation5 [shape = 'u8[32768]{0}', space=vmem, size = 0x8000, scoped, tag = 'input window, operand 3, single buffered']
    #allocation6 [shape = 's32[1]{0}', space=sflag, size = 0x4, scoped, tag = 'scoped memory for mlp_forward.1']
    %10 = vsyncpa [#allocation4], 0
    %11 = vsyncpa [#allocation6], 0
    // Predicated region
    $region2: #{mlp_forward.1} parent=1 // pred_check
      _
    $region3: #{mlp_forward.1} parent=1 // pred_check_branch
      %13 = sbr.rel (0) target = $region5
    $region4: #{mlp_forward.1} parent=1 // pred_region
      _
    $region5: #{mlp_forward.1} parent=1 // pred_fallthru
      _
    // Predicated region
    $region6: #{mlp_forward.1} parent=1 // pred_check
      _
    $region7: #{mlp_forward.1} parent=1 // pred_check_branch
      %15 = sbr.rel (0) target = $region9
    $region8: #{mlp_forward.1} parent=1 // pred_region
      %17 = vsyncadd [#allocation4], 0
      %s18 = sshll.u32 %s1, 4
      %s19 = int_to_ptr.hbm [resolvable:$true] %s18
      %s20 = sshll.u32 [#allocation3], 4
      %s21 = int_to_ptr.vmem [resolvable:$true] %s20
      %26 = dma.hbm_to_vmem [thread:$0]  %s19, 1024, %s21, [#allocation4], 64, 64, 4
    $region9: #{mlp_forward.1} parent=1 // pred_fallthru
      _
    // Predicated region
    $region10: #{mlp_forward.1} parent=1 // pred_check
      _
    $region11: #{mlp_forward.1} parent=1 // pred_check_branch
      %28 = sbr.rel (0) target = $region13
    $region12: #{mlp_forward.1} parent=1 // pred_region
      _
    $region13: #{mlp_forward.1} parent=1 // pred_fallthru
      _
    // Predicated region
    $region14: #{mlp_forward.1} parent=1 // pred_check
      _
    $region15: #{mlp_forward.1} parent=1 // pred_check_branch
      %30 = sbr.rel (0) target = $region17
    $region16: #{mlp_forward.1} parent=1 // pred_region
      %32 = vsyncadd [#allocation6], 0
      %s33 = sshll.u32 %s3, 4
      %s34 = int_to_ptr.hbm [resolvable:$true] %s33
      %s35 = sshll.u32 [#allocation5], 4
      %s36 = int_to_ptr.vmem [resolvable:$true] %s35
      %41 = dma.hbm_to_vmem [thread:$0]  %s34, 1024, %s36, [#allocation6], 64, 64, 4
    $region17: #{mlp_forward.1} parent=1 // pred_fallthru
      _
    // Predicated region
    $region18: #{mlp_forward.1} parent=1 // pred_check
      _
    $region19: #{mlp_forward.1} parent=1 // pred_check_branch
      %43 = sbr.rel (0) target = $region21
    $region20: #{mlp_forward.1} parent=1 // pred_region
      _
    $region21: #{mlp_forward.1} parent=1 // pred_fallthru
      _
    // Predicated region
    $region22: #{mlp_forward.1} parent=1 // pred_check
      _
    $region23: #{mlp_forward.1} parent=1 // pred_check_branch
      %45 = sbr.rel (0) target = $region25
    $region24: #{mlp_forward.1} parent=1 // pred_region
      %47 = dma.done [#allocation4], 1024
    $region25: #{mlp_forward.1} parent=1 // pred_fallthru
      _
    // Predicated region
    $region26: #{mlp_forward.1} parent=1 // pred_check
      _
    $region27: #{mlp_forward.1} parent=1 // pred_check_branch
      %49 = sbr.rel (0) target = $region29
    $region28: #{mlp_forward.1} parent=1 // pred_region
      %51 = dma.done [#allocation6], 1024
    $region29: #{mlp_forward.1} parent=1 // pred_fallthru
      _
    %p52 = scmp.eq.s32.totalorder 0, 0
    // Predicated region
    $region30: #{mlp_forward.1} parent=1 // pred_check
      %p53 = pneg %p52
    $region31: #{mlp_forward.1} parent=1 // pred_check_branch
      %55 = sbr.rel (%p53) target = $region33
    $region32: #{mlp_forward.1} parent=1 // pred_region
      %56 = vst [vmem:[#allocation2] sm:$0xff] 0.0
      %57 = vst [vmem:[#allocation2 + $0x8] sm:$0xff] 0.0
    $region33: #{mlp_forward.1} parent=1 // pred_fallthru
      _
    %v58 = vld [vmem:[%s0] sm:$0xf]
    %v59 = vld [vmem:[%s0 + $0x4] sm:$0xf]
    %v60 = vld [vmem:[#allocation3] sm:$0xf]
    %v61 = vld [vmem:[#allocation3 + $0x4] sm:$0xf]
    %v62 = vld [vmem:[#allocation3 + $0x8] sm:$0xf]
    %v63 = vld [vmem:[#allocation3 + $0xc] sm:$0xf]
    %v64 = vld [vmem:[#allocation3 + $0x10] sm:$0xf]
    %v65 = vld [vmem:[#allocation3 + $0x14] sm:$0xf]
    %v66 = vld [vmem:[#allocation3 + $0x18] sm:$0xf]
    %v67 = vld [vmem:[#allocation3 + $0x1c] sm:$0xf]
    %v68 = vld [vmem:[#allocation3 + $0x20] sm:$0xf]
    %v69 = vld [vmem:[#allocation3 + $0x24] sm:$0xf]
    %v70 = vld [vmem:[#allocation3 + $0x28] sm:$0xf]
    %v71 = vld [vmem:[#allocation3 + $0x2c] sm:$0xf]
    %v72 = vld [vmem:[#allocation3 + $0x30] sm:$0xf]
    %v73 = vld [vmem:[#allocation3 + $0x34] sm:$0xf]
    %v74 = vld [vmem:[#allocation3 + $0x38] sm:$0xf]
    %v75 = vld [vmem:[#allocation3 + $0x3c] sm:$0xf]
    %v76 = vld [vmem:[%s2] sm:$0x1]
    %v78 = vperm.slane %v76, 0
    %v82 = vunpack.c.l.b16 %v58
    %v83 = vunpack.c.l.b16 %v59
    %v84 = vpack.c.b16 %v83, %v82
    %v102 = vunpack.c.l.b16 %v60
    %v103 = vunpack.c.l.b16 %v61
    %v104 = vunpack.c.l.b16 %v62
    %v105 = vunpack.c.l.b16 %v63
    %v106 = vunpack.c.l.b16 %v64
    %v107 = vunpack.c.l.b16 %v65
    %v108 = vunpack.c.l.b16 %v66
    %v109 = vunpack.c.l.b16 %v67
    %v110 = vunpack.c.l.b16 %v68
    %v111 = vunpack.c.l.b16 %v69
    %v112 = vunpack.c.l.b16 %v70
    %v113 = vunpack.c.l.b16 %v71
    %v114 = vunpack.c.l.b16 %v72
    %v115 = vunpack.c.l.b16 %v73
    %v116 = vunpack.c.l.b16 %v74
    %v117 = vunpack.c.l.b16 %v75
    %v118 = vpack.c.b16 %v103, %v102
    %v119 = vpack.c.b16 %v105, %v104
    %v120 = vpack.c.b16 %v107, %v106
    %v121 = vpack.c.b16 %v109, %v108
    %v122 = vpack.c.b16 %v111, %v110
    %v123 = vpack.c.b16 %v113, %v112
    %v124 = vpack.c.b16 %v115, %v114
    %v125 = vpack.c.b16 %v117, %v116
    %134 = vmatpush.bf16.msra.mxu0 %v125
    %135 = vmatpush.bf16.msra.mxu0 %v124
    %136 = vmatpush.bf16.msra.mxu0 %v123
    %137 = vmatpush.bf16.msra.mxu0 %v122
    %138 = vmatpush.bf16.msra.mxu0 %v121
    %139 = vmatpush.bf16.msra.mxu0 %v120
    %140 = vmatpush.bf16.msra.mxu0 %v119
    %141 = vmatpush.bf16.msra.mxu0 %v118
    %142 = vmatmul.bf16.gmra.mxu0 %v84
    %v143 = vpop.f32.mrf.mxu0
    %v144 = vadd.f32 %v78, %v143
    %v145 = vpop.f32.mrf.mxu0
    %v146 = vadd.f32 %v78, %v145
    %147 = vdwg.mxu0
    %v148 = vmax.f32 %v144, 0.0
    %v149 = vmax.f32 %v146, 0.0
    %v150 = vld [vmem:[#allocation2] sm:$0xff]
    %v151 = vld [vmem:[#allocation2 + $0x8] sm:$0xff]
    %v152 = vpack.c.bf16 %v149, %v148
    %v153 = vld [vmem:[#allocation5] sm:$0xf]
    %v154 = vld [vmem:[#allocation5 + $0x4] sm:$0xf]
    %v155 = vld [vmem:[#allocation5 + $0x8] sm:$0xf]
    %v156 = vld [vmem:[#allocation5 + $0xc] sm:$0xf]
    %v157 = vld [vmem:[#allocation5 + $0x10] sm:$0xf]
    %v158 = vld [vmem:[#allocation5 + $0x14] sm:$0xf]
    %v159 = vld [vmem:[#allocation5 + $0x18] sm:$0xf]
    %v160 = vld [vmem:[#allocation5 + $0x1c] sm:$0xf]
    %v161 = vld [vmem:[#allocation5 + $0x20] sm:$0xf]
    %v162 = vld [vmem:[#allocation5 + $0x24] sm:$0xf]
    %v163 = vld [vmem:[#allocation5 + $0x28] sm:$0xf]
    %v164 = vld [vmem:[#allocation5 + $0x2c] sm:$0xf]
    %v165 = vld [vmem:[#allocation5 + $0x30] sm:$0xf]
    %v166 = vld [vmem:[#allocation5 + $0x34] sm:$0xf]
    %v167 = vld [vmem:[#allocation5 + $0x38] sm:$0xf]
    %v168 = vld [vmem:[#allocation5 + $0x3c] sm:$0xf]
    %v185 = vunpack.c.l.b16 %v153
    %v186 = vunpack.c.l.b16 %v154
    %v187 = vunpack.c.l.b16 %v155
    %v188 = vunpack.c.l.b16 %v156
    %v189 = vunpack.c.l.b16 %v157
    %v190 = vunpack.c.l.b16 %v158
    %v191 = vunpack.c.l.b16 %v159
    %v192 = vunpack.c.l.b16 %v160
    %v193 = vunpack.c.l.b16 %v161
    %v194 = vunpack.c.l.b16 %v162
    %v195 = vunpack.c.l.b16 %v163
    %v196 = vunpack.c.l.b16 %v164
    %v197 = vunpack.c.l.b16 %v165
    %v198 = vunpack.c.l.b16 %v166
    %v199 = vunpack.c.l.b16 %v167
    %v200 = vunpack.c.l.b16 %v168
    %v201 = vpack.c.b16 %v186, %v185
    %v202 = vpack.c.b16 %v188, %v187
    %v203 = vpack.c.b16 %v190, %v189
    %v204 = vpack.c.b16 %v192, %v191
    %v205 = vpack.c.b16 %v194, %v193
    %v206 = vpack.c.b16 %v196, %v195
    %v207 = vpack.c.b16 %v198, %v197
    %v208 = vpack.c.b16 %v200, %v199
    %217 = vmatpush.bf16.msra.mxu0 %v208
    %218 = vmatpush.bf16.msra.mxu0 %v207
    %219 = vmatpush.bf16.msra.mxu0 %v206
    %220 = vmatpush.bf16.msra.mxu0 %v205
    %221 = vmatpush.bf16.msra.mxu0 %v204
    %222 = vmatpush.bf16.msra.mxu0 %v203
    %223 = vmatpush.bf16.msra.mxu0 %v202
    %224 = vmatpush.bf16.msra.mxu0 %v201
    %225 = vmatmul.bf16.gmra.mxu0 %v152
    %v226 = vpop.f32.mrf.mxu0
    %v227 = vadd.f32 0.0, %v226
    %v228 = vpop.f32.mrf.mxu0
    %v229 = vadd.f32 0.0, %v228
    %230 = vdwg.mxu0
    %v231 = vadd.f32 %v150, %v227
    %v232 = vadd.f32 %v151, %v229
    %233 = vst [vmem:[#allocation2] sm:$0xff] %v231
    %234 = vst [vmem:[#allocation2 + $0x8] sm:$0xff] %v232
    // Predicated region
    $region34: #{mlp_forward.1} parent=1 // pred_check
      %p235 = pneg %p52
    $region35: #{mlp_forward.1} parent=1 // pred_check_branch
      %237 = sbr.rel (%p235) target = $region37
    $region36: #{mlp_forward.1} parent=1 // pred_region
      %v238 = vld [vmem:[#allocation2] sm:$0xff]
      %v239 = vld [vmem:[#allocation2 + $0x8] sm:$0xff]
      %v240 = vld [vmem:[%s4] sm:$0x1]
      %v242 = vperm.slane %v240, 0
      %v244 = vadd.f32 %v238, %v242
      %v245 = vadd.f32 %v239, %v242
      %246 = vst [vmem:[%s5] sm:$0xff] %v244
      %247 = vst [vmem:[%s5 + $0x8] sm:$0xff] %v245
    $region37: #{mlp_forward.1} parent=1 // pred_fallthru
      _
    // Predicated region
    $region38: #{mlp_forward.1} parent=1 // pred_check
      _
    $region39: #{mlp_forward.1} parent=1 // pred_check_branch
      %249 = sbr.rel (0) target = $region41
    $region40: #{mlp_forward.1} parent=1 // pred_region
      _
    $region41: #{mlp_forward.1} parent=1 // pred_fallthru
      _
    // Predicated region
    $region42: #{mlp_forward.1} parent=1 // pred_check
      _
    $region43: #{mlp_forward.1} parent=1 // pred_check_branch
      %251 = sbr.rel (0) target = $region45
    $region44: #{mlp_forward.1} parent=1 // pred_region
      _
    $region45: #{mlp_forward.1} parent=1 // pred_fallthru
      _
    %252 = vsyncpa [#allocation4], 1
    %253 = vsyncpa [#allocation6], 1

</llo_original>
